<compile_context>
chip_gen: v7x
topology: tpu7x:2x2x1
jax: 0.10.0
libtpu: 0.0.40
codegen_flags: <defaults>
</compile_context>

<pallas_src>
import jax
import jax.numpy as jnp
from jax import lax
from jax.experimental import pallas as pl
from jax.experimental.pallas import tpu as pltpu


def _round_up(x, m):
    return ((x + m - 1) // m) * m


def _spiking_dense_kernel(x_ref, w_ref, d_ref, inv_norm_ref, b_ref, beta_ref,
                          spk_rec_ref, loss_ref, h_ref):
    # x_ref:        (T, Bt, Nin)   time-major input tile
    # w_ref:        (Nin, Np)      padded weights
    # d_ref:        (Np, Np)       W^T W (precomputed)
    # inv_norm_ref: (1, Np)        1 / (sum(W^2, 0) + eps)
    # b_ref:        (1, Np)        thresholds (padded lanes = 1 -> never spike)
    # beta_ref:     (1, Np)        beta broadcast to a lane row
    # spk_rec_ref:  (T, Bt, Np)    output spikes, time-major, lane-dense
    # loss_ref:     (1, 8, 128)    per-tile partial spike count
    # h_ref:        (T, Bt, Np)    VMEM scratch for the hoisted projection
    T, Bt, Nin = x_ref.shape
    Np = w_ref.shape[1]

    # ---- hoisted input projection: ONE big MXU matmul (T*Bt, Nin)x(Nin, Np) ----
    x_flat = x_ref[...].astype(jnp.float32).reshape(T * Bt, Nin)
    h = jnp.dot(x_flat, w_ref[...].astype(jnp.float32),
                preferred_element_type=jnp.float32)
    h_ref[...] = h.reshape(T, Bt, Np)

    # ---- loop-invariant rows, hoisted out of the recurrence ----
    d = d_ref[...]                      # (Np, Np)
    inv_norm = inv_norm_ref[...]        # (1, Np)
    b = b_ref[...]                      # (1, Np)
    beta = beta_ref[...]                # (1, Np)
    one_minus_beta = 1.0 - beta         # (1, Np)

    mem0 = jnp.zeros((Bt, Np), jnp.float32)
    spk0 = jnp.zeros((Bt, Np), jnp.float32)
    cnt0 = jnp.zeros((Bt, Np), jnp.float32)

    def step(t, carry):
        mem, spk, cnt = carry
        # Only the truly recurrent matmul stays inside the loop.
        rst = jnp.dot(spk, d, preferred_element_type=jnp.float32)     # (Bt, Np)
        mem = (mem - rst) * beta + h_ref[t] * one_minus_beta
        mthr = mem * inv_norm - b
        new_spk = (mthr > 0.0).astype(jnp.float32)                    # Heaviside fwd
        spk_rec_ref[t] = new_spk.astype(spk_rec_ref.dtype)            # dense (Bt, Np) store
        return mem, new_spk, cnt + new_spk

    unroll = True if T <= 16 else 8
    _, _, cnt = lax.fori_loop(0, T, step, (mem0, spk0, cnt0), unroll=unroll)

    # Spikes are 0/1 so sum(spk^2) == sum(spk): emit per-tile partial sum.
    loss_ref[...] = jnp.full(loss_ref.shape, jnp.sum(cnt), jnp.float32)


def spiking_dense_forward(x, w, beta, b, eps=1e-8, block_b=None):
    """x: (B, T, Nin); w: (Nin, Nout); beta: (1,); b: (Nout,).

    Returns (spk_rec (B, T, Nout), loss scalar) matching the PyTorch module.
    """
    B, T, Nin = x.shape
    Nout = w.shape[1]
    out_dtype = x.dtype
    f32 = jnp.float32

    LANE, SUB = 128, 8
    Np = _round_up(Nout, LANE)                    # lane-dense output width

    if block_b is None:
        block_b = min(64, _round_up(B, SUB))      # vreg/VMEM-budget-conscious default
    block_b = max(SUB, _round_up(block_b, SUB))
    Bp = _round_up(B, block_b)
    num_tiles = Bp // block_b

    # ---- loop-invariant parameters, precomputed once in plain JAX ----
    w_pad = jnp.zeros((Nin, Np), f32).at[:, :Nout].set(w.astype(f32))
    d_pad = jnp.dot(w_pad.T, w_pad)                                   # W^T W
    norm = jnp.sum(w_pad * w_pad, axis=0, keepdims=True)              # (1, Np)
    inv_norm = 1.0 / (norm + eps)
    # Padded lanes get threshold b=1 so they can never spike (mem stays 0 there).
    b_pad = jnp.ones((1, Np), f32).at[:, :Nout].set(b.astype(f32).reshape(1, Nout))
    beta_row = jnp.broadcast_to(beta.astype(f32).reshape(1, 1), (1, Np))

    # ---- time-major, batch-padded input: (T, Bp, Nin) ----
    x_tm = jnp.transpose(x, (1, 0, 2))
    if Bp != B:
        x_tm = jnp.pad(x_tm, ((0, 0), (0, Bp - B), (0, 0)))

    grid_spec = pltpu.PrefetchScalarGridSpec(
        num_scalar_prefetch=0,
        grid=(num_tiles,),
        in_specs=[
            pl.BlockSpec((T, block_b, Nin), lambda i: (0, i, 0)),   # x tile (time-major)
            pl.BlockSpec((Nin, Np), lambda i: (0, 0)),              # w (resident)
            pl.BlockSpec((Np, Np), lambda i: (0, 0)),               # d = W^T W
            pl.BlockSpec((1, Np), lambda i: (0, 0)),                # 1/(norm+eps)
            pl.BlockSpec((1, Np), lambda i: (0, 0)),                # b
            pl.BlockSpec((1, Np), lambda i: (0, 0)),                # beta
        ],
        out_specs=(
            pl.BlockSpec((T, block_b, Np), lambda i: (0, i, 0)),    # spk_rec tile
            pl.BlockSpec((1, SUB, LANE), lambda i: (i, 0, 0)),      # per-tile loss partial
        ),
        scratch_shapes=[pltpu.VMEM((T, block_b, Np), jnp.float32)], # H scratch
    )

    spk_tm, loss_part = pl.pallas_call(
        _spiking_dense_kernel,
        grid_spec=grid_spec,
        out_shape=(
            jax.ShapeDtypeStruct((T, Bp, Np), out_dtype),
            jax.ShapeDtypeStruct((num_tiles, SUB, LANE), jnp.float32),
        ),
        compiler_params=pltpu.CompilerParams(
            dimension_semantics=("parallel",),          # batch tiles are independent
            vmem_limit_bytes=40 * 1024 * 1024,          # fits v7x 64 MiB per-TC VMEM
        ),
    )(x_tm, w_pad, d_pad, inv_norm, b_pad, beta_row)

    # Back to the PyTorch layout; drop batch/output padding.
    spk_rec = jnp.transpose(spk_tm, (1, 0, 2))[:B, :, :Nout]
    loss = 0.5 * jnp.sum(loss_part[:, 0, 0]) / jnp.float32(B * T * Nout)
    return spk_rec, loss


def init_params(key, nb_inputs, nb_outputs, w_init_mean=0.0, w_init_std=1.0):
    kw, kbeta, kb = jax.random.split(key, 3)
    w = w_init_mean + w_init_std * jnp.sqrt(1.0 / nb_inputs) * \
        jax.random.normal(kw, (nb_inputs, nb_outputs), jnp.float32)
    beta = 0.7 + 0.01 * jax.random.normal(kbeta, (1,), jnp.float32)
    beta = jnp.clip(beta, 0.0, 1.0)
    b = 1.0 + 0.01 * jax.random.normal(kb, (nb_outputs,), jnp.float32)
    b = jnp.maximum(b, 0.0)
    return w, beta, b


def _ref_forward(x, w, beta, b, eps=1e-8):
    """Pure-JAX reference matching the PyTorch module (forward only)."""
    B, T, _ = x.shape
    Nout = w.shape[1]
    h = jnp.einsum('abc,cd->abd', x, w)
    d = w.T @ w
    inv = 1.0 / (jnp.sum(w * w, axis=0) + eps)
    mem = jnp.zeros((B, Nout), x.dtype)
    spk = jnp.zeros((B, Nout), x.dtype)
    recs = []
    for t in range(T):
        rst = spk @ d
        mem = (mem - rst) * beta + h[:, t, :] * (1.0 - beta)
        mthr = mem * inv - b
        spk = (mthr > 0).astype(x.dtype)
        recs.append(spk)
    spk_rec = jnp.stack(recs, axis=1)
    return spk_rec, 0.5 * jnp.mean(spk_rec ** 2)


if __name__ == "__main__":
    key = jax.random.PRNGKey(0)
    k_x, k_p = jax.random.split(key)

    batch, nb_steps, nb_inputs, nb_outputs = 2, 8, 32, 16
    x = jax.random.normal(k_x, (batch, nb_steps, nb_inputs), jnp.float32)
    w, beta, b = init_params(k_p, nb_inputs, nb_outputs,
                             w_init_mean=0.0, w_init_std=1.0)

    spk_rec, loss = jax.jit(spiking_dense_forward)(x, w, beta, b)
    jax.block_until_ready((spk_rec, loss))

    assert spk_rec.shape == (batch, nb_steps, nb_outputs)
    assert loss.shape == ()

    # Sanity check against the pure-JAX reference (lenient tolerances to allow
    # for f32 matmul reassociation near the spike threshold).
    ref_spk, ref_loss = _ref_forward(x, w, beta, b)
    mismatch = float(jnp.mean(jnp.abs(spk_rec.astype(jnp.float32) -
                                      ref_spk.astype(jnp.float32))))
    assert mismatch < 1e-2, f"spike mismatch fraction {mismatch}"
    assert abs(float(loss) - float(ref_loss)) < 2e-2, (float(loss), float(ref_loss))

    print("KERNEL_OK")
</pallas_src>

<mosaic_0001>
module attributes {stable_mosaic.version = 11 : i64} {
  func.func @_spiking_dense_kernel(%arg0: i32, %arg1: memref<8x8x32xf32, #tpu.memory_space<vmem>>, %arg2: memref<32x128xf32, #tpu.memory_space<vmem>>, %arg3: memref<128x128xf32, #tpu.memory_space<vmem>>, %arg4: memref<1x128xf32, #tpu.memory_space<vmem>>, %arg5: memref<1x128xf32, #tpu.memory_space<vmem>>, %arg6: memref<1x128xf32, #tpu.memory_space<vmem>>, %arg7: memref<8x8x128xf32, #tpu.memory_space<vmem>>, %arg8: memref<1x8x128xf32, #tpu.memory_space<vmem>>, %arg9: memref<8x8x128xf32, #tpu.memory_space<vmem>>) attributes {dimension_semantics = [#tpu.dimension_semantics<parallel>], iteration_bounds = array<i64: 1>, scalar_prefetch = 0 : i64, scratch_operands = 1 : i64, tpu.core_type = #tpu.core_type<tc>, window_params = [{transform_indices = @transform_0, window_bounds = array<i64: 8, 8, 32>}, {pipeline_mode = #tpu.pipeline_mode<synchronous>, transform_indices = @transform_1, window_bounds = array<i64: 32, 128>}, {pipeline_mode = #tpu.pipeline_mode<synchronous>, transform_indices = @transform_2, window_bounds = array<i64: 128, 128>}, {pipeline_mode = #tpu.pipeline_mode<synchronous>, transform_indices = @transform_3, window_bounds = array<i64: 1, 128>}, {pipeline_mode = #tpu.pipeline_mode<synchronous>, transform_indices = @transform_4, window_bounds = array<i64: 1, 128>}, {pipeline_mode = #tpu.pipeline_mode<synchronous>, transform_indices = @transform_5, window_bounds = array<i64: 1, 128>}, {transform_indices = @transform_6, window_bounds = array<i64: 8, 8, 128>}, {transform_indices = @transform_7, window_bounds = array<i64: 1, 8, 128>}]} {
    %c0 = arith.constant 0 : index
    %c0_0 = arith.constant 0 : index
    %c0_1 = arith.constant 0 : index
    %0 = vector.load %arg1[%c0, %c0_0, %c0_1] : memref<8x8x32xf32, #tpu.memory_space<vmem>>, vector<8x8x32xf32>
    %1 = vector.shape_cast %0 : vector<8x8x32xf32> to vector<64x32xf32>
    %c0_2 = arith.constant 0 : index
    %c0_3 = arith.constant 0 : index
    %2 = vector.load %arg2[%c0_2, %c0_3] : memref<32x128xf32, #tpu.memory_space<vmem>>, vector<32x128xf32>
    %cst = arith.constant dense<0.000000e+00> : vector<64x128xf32>
    %3 = tpu.matmul %1, %2, %cst {dimension_numbers = #tpu.dot_dimension_numbers<[1], [0], [0], [1], [0, 0, 1, 1], [], []>} : vector<64x32xf32>, vector<32x128xf32>, vector<64x128xf32> -> vector<64x128xf32>
    %4 = vector.shape_cast %3 : vector<64x128xf32> to vector<8x8x128xf32>
    %c0_4 = arith.constant 0 : index
    %c0_5 = arith.constant 0 : index
    %c0_6 = arith.constant 0 : index
    %5 = vector.load %arg9[%c0_4, %c0_5, %c0_6] : memref<8x8x128xf32, #tpu.memory_space<vmem>>, vector<8x8x128xf32>
    tpu.vector_store %arg9[%c0_4, %c0_5, %c0_6], %4 {strides = array<i32>} : memref<8x8x128xf32, #tpu.memory_space<vmem>>, vector<8x8x128xf32>,
    %c0_7 = arith.constant 0 : index
    %c0_8 = arith.constant 0 : index
    %6 = vector.load %arg3[%c0_7, %c0_8] : memref<128x128xf32, #tpu.memory_space<vmem>>, vector<128x128xf32>
    %c0_9 = arith.constant 0 : index
    %c0_10 = arith.constant 0 : index
    %7 = vector.load %arg4[%c0_9, %c0_10] : memref<1x128xf32, #tpu.memory_space<vmem>>, vector<1x128xf32>
    %c0_11 = arith.constant 0 : index
    %c0_12 = arith.constant 0 : index
    %8 = vector.load %arg5[%c0_11, %c0_12] : memref<1x128xf32, #tpu.memory_space<vmem>>, vector<1x128xf32>
    %c0_13 = arith.constant 0 : index
    %c0_14 = arith.constant 0 : index
    %9 = vector.load %arg6[%c0_13, %c0_14] : memref<1x128xf32, #tpu.memory_space<vmem>>, vector<1x128xf32>
    %cst_15 = arith.constant 1.000000e+00 : f32
    %10 = vector.broadcast %cst_15 : f32 to vector<1x128xf32>
    %11 = arith.subf %10, %9 : vector<1x128xf32>
    %cst_16 = arith.constant 0.000000e+00 : f32
    %12 = vector.broadcast %cst_16 : f32 to vector<8x128xf32>
    %cst_17 = arith.constant 0.000000e+00 : f32
    %13 = vector.broadcast %cst_17 : f32 to vector<8x128xf32>
    %cst_18 = arith.constant 0.000000e+00 : f32
    %14 = vector.broadcast %cst_18 : f32 to vector<8x128xf32>
    %c0_i32 = arith.constant 0 : i32
    %cst_19 = arith.constant dense<0.000000e+00> : vector<8x128xf32>
    %15 = tpu.matmul %13, %6, %cst_19 {dimension_numbers = #tpu.dot_dimension_numbers<[1], [0], [0], [1], [0, 0, 1, 1], [], []>} : vector<8x128xf32>, vector<128x128xf32>, vector<8x128xf32> -> vector<8x128xf32>
    %16 = arith.subf %12, %15 : vector<8x128xf32>
    %17 = vector.broadcast %9 : vector<1x128xf32> to vector<8x128xf32>
    %18 = arith.mulf %16, %17 : vector<8x128xf32>
    %19 = arith.index_cast %c0_i32 : i32 to index
    %c0_20 = arith.constant 0 : index
    %c0_21 = arith.constant 0 : index
    %20 = vector.load %arg9[%19, %c0_20, %c0_21] : memref<8x8x128xf32, #tpu.memory_space<vmem>>, vector<1x8x128xf32>
    %21 = vector.shape_cast %20 : vector<1x8x128xf32> to vector<8x128xf32>
    %22 = vector.broadcast %11 : vector<1x128xf32> to vector<8x128xf32>
    %23 = arith.mulf %21, %22 : vector<8x128xf32>
    %24 = arith.addf %18, %23 : vector<8x128xf32>
    %25 = vector.broadcast %7 : vector<1x128xf32> to vector<8x128xf32>
    %26 = arith.mulf %24, %25 : vector<8x128xf32>
    %27 = vector.broadcast %8 : vector<1x128xf32> to vector<8x128xf32>
    %28 = arith.subf %26, %27 : vector<8x128xf32>
    %cst_22 = arith.constant 0.000000e+00 : f32
    %29 = vector.broadcast %cst_22 : f32 to vector<8x128xf32>
    %30 = arith.cmpf ogt, %28, %29 : vector<8x128xf32>
    %31 = arith.extui %30 : vector<8x128xi1> to vector<8x128xi32>
    %32 = arith.sitofp %31 : vector<8x128xi32> to vector<8x128xf32>
    %33 = arith.index_cast %c0_i32 : i32 to index
    %c0_23 = arith.constant 0 : index
    %c0_24 = arith.constant 0 : index
    %34 = vector.load %arg7[%33, %c0_23, %c0_24] : memref<8x8x128xf32, #tpu.memory_space<vmem>>, vector<1x8x128xf32>
    %35 = vector.shape_cast %34 : vector<1x8x128xf32> to vector<8x128xf32>
    %36 = vector.shape_cast %32 : vector<8x128xf32> to vector<1x8x128xf32>
    tpu.vector_store %arg7[%33, %c0_23, %c0_24], %36 {strides = array<i32>} : memref<8x8x128xf32, #tpu.memory_space<vmem>>, vector<1x8x128xf32>,
    %37 = arith.addf %14, %32 : vector<8x128xf32>
    %c1_i32 = arith.constant 1 : i32
    %cst_25 = arith.constant dense<0.000000e+00> : vector<8x128xf32>
    %38 = tpu.matmul %32, %6, %cst_25 {dimension_numbers = #tpu.dot_dimension_numbers<[1], [0], [0], [1], [0, 0, 1, 1], [], []>} : vector<8x128xf32>, vector<128x128xf32>, vector<8x128xf32> -> vector<8x128xf32>
    %39 = arith.subf %24, %38 : vector<8x128xf32>
    %40 = vector.broadcast %9 : vector<1x128xf32> to vector<8x128xf32>
    %41 = arith.mulf %39, %40 : vector<8x128xf32>
    %42 = arith.index_cast %c1_i32 : i32 to index
    %c0_26 = arith.constant 0 : index
    %c0_27 = arith.constant 0 : index
    %43 = vector.load %arg9[%42, %c0_26, %c0_27] : memref<8x8x128xf32, #tpu.memory_space<vmem>>, vector<1x8x128xf32>
    %44 = vector.shape_cast %43 : vector<1x8x128xf32> to vector<8x128xf32>
    %45 = vector.broadcast %11 : vector<1x128xf32> to vector<8x128xf32>
    %46 = arith.mulf %44, %45 : vector<8x128xf32>
    %47 = arith.addf %41, %46 : vector<8x128xf32>
    %48 = vector.broadcast %7 : vector<1x128xf32> to vector<8x128xf32>
    %49 = arith.mulf %47, %48 : vector<8x128xf32>
    %50 = vector.broadcast %8 : vector<1x128xf32> to vector<8x128xf32>
    %51 = arith.subf %49, %50 : vector<8x128xf32>
    %cst_28 = arith.constant 0.000000e+00 : f32
    %52 = vector.broadcast %cst_28 : f32 to vector<8x128xf32>
    %53 = arith.cmpf ogt, %51, %52 : vector<8x128xf32>
    %54 = arith.extui %53 : vector<8x128xi1> to vector<8x128xi32>
    %55 = arith.sitofp %54 : vector<8x128xi32> to vector<8x128xf32>
    %56 = arith.index_cast %c1_i32 : i32 to index
    %c0_29 = arith.constant 0 : index
    %c0_30 = arith.constant 0 : index
    %57 = vector.load %arg7[%56, %c0_29, %c0_30] : memref<8x8x128xf32, #tpu.memory_space<vmem>>, vector<1x8x128xf32>
    %58 = vector.shape_cast %57 : vector<1x8x128xf32> to vector<8x128xf32>
    %59 = vector.shape_cast %55 : vector<8x128xf32> to vector<1x8x128xf32>
    tpu.vector_store %arg7[%56, %c0_29, %c0_30], %59 {strides = array<i32>} : memref<8x8x128xf32, #tpu.memory_space<vmem>>, vector<1x8x128xf32>,
    %60 = arith.addf %37, %55 : vector<8x128xf32>
    %c2_i32 = arith.constant 2 : i32
    %cst_31 = arith.constant dense<0.000000e+00> : vector<8x128xf32>
    %61 = tpu.matmul %55, %6, %cst_31 {dimension_numbers = #tpu.dot_dimension_numbers<[1], [0], [0], [1], [0, 0, 1, 1], [], []>} : vector<8x128xf32>, vector<128x128xf32>, vector<8x128xf32> -> vector<8x128xf32>
    %62 = arith.subf %47, %61 : vector<8x128xf32>
    %63 = vector.broadcast %9 : vector<1x128xf32> to vector<8x128xf32>
    %64 = arith.mulf %62, %63 : vector<8x128xf32>
    %65 = arith.index_cast %c2_i32 : i32 to index
    %c0_32 = arith.constant 0 : index
    %c0_33 = arith.constant 0 : index
    %66 = vector.load %arg9[%65, %c0_32, %c0_33] : memref<8x8x128xf32, #tpu.memory_space<vmem>>, vector<1x8x128xf32>
    %67 = vector.shape_cast %66 : vector<1x8x128xf32> to vector<8x128xf32>
    %68 = vector.broadcast %11 : vector<1x128xf32> to vector<8x128xf32>
    %69 = arith.mulf %67, %68 : vector<8x128xf32>
    %70 = arith.addf %64, %69 : vector<8x128xf32>
    %71 = vector.broadcast %7 : vector<1x128xf32> to vector<8x128xf32>
    %72 = arith.mulf %70, %71 : vector<8x128xf32>
    %73 = vector.broadcast %8 : vector<1x128xf32> to vector<8x128xf32>
    %74 = arith.subf %72, %73 : vector<8x128xf32>
    %cst_34 = arith.constant 0.000000e+00 : f32
    %75 = vector.broadcast %cst_34 : f32 to vector<8x128xf32>
    %76 = arith.cmpf ogt, %74, %75 : vector<8x128xf32>
    %77 = arith.extui %76 : vector<8x128xi1> to vector<8x128xi32>
    %78 = arith.sitofp %77 : vector<8x128xi32> to vector<8x128xf32>
    %79 = arith.index_cast %c2_i32 : i32 to index
    %c0_35 = arith.constant 0 : index
    %c0_36 = arith.constant 0 : index
    %80 = vector.load %arg7[%79, %c0_35, %c0_36] : memref<8x8x128xf32, #tpu.memory_space<vmem>>, vector<1x8x128xf32>
    %81 = vector.shape_cast %80 : vector<1x8x128xf32> to vector<8x128xf32>
    %82 = vector.shape_cast %78 : vector<8x128xf32> to vector<1x8x128xf32>
    tpu.vector_store %arg7[%79, %c0_35, %c0_36], %82 {strides = array<i32>} : memref<8x8x128xf32, #tpu.memory_space<vmem>>, vector<1x8x128xf32>,
    %83 = arith.addf %60, %78 : vector<8x128xf32>
    %c3_i32 = arith.constant 3 : i32
    %cst_37 = arith.constant dense<0.000000e+00> : vector<8x128xf32>
    %84 = tpu.matmul %78, %6, %cst_37 {dimension_numbers = #tpu.dot_dimension_numbers<[1], [0], [0], [1], [0, 0, 1, 1], [], []>} : vector<8x128xf32>, vector<128x128xf32>, vector<8x128xf32> -> vector<8x128xf32>
    %85 = arith.subf %70, %84 : vector<8x128xf32>
    %86 = vector.broadcast %9 : vector<1x128xf32> to vector<8x128xf32>
    %87 = arith.mulf %85, %86 : vector<8x128xf32>
    %88 = arith.index_cast %c3_i32 : i32 to index
    %c0_38 = arith.constant 0 : index
    %c0_39 = arith.constant 0 : index
    %89 = vector.load %arg9[%88, %c0_38, %c0_39] : memref<8x8x128xf32, #tpu.memory_space<vmem>>, vector<1x8x128xf32>
    %90 = vector.shape_cast %89 : vector<1x8x128xf32> to vector<8x128xf32>
    %91 = vector.broadcast %11 : vector<1x128xf32> to vector<8x128xf32>
    %92 = arith.mulf %90, %91 : vector<8x128xf32>
    %93 = arith.addf %87, %92 : vector<8x128xf32>
    %94 = vector.broadcast %7 : vector<1x128xf32> to vector<8x128xf32>
    %95 = arith.mulf %93, %94 : vector<8x128xf32>
    %96 = vector.broadcast %8 : vector<1x128xf32> to vector<8x128xf32>
    %97 = arith.subf %95, %96 : vector<8x128xf32>
    %cst_40 = arith.constant 0.000000e+00 : f32
    %98 = vector.broadcast %cst_40 : f32 to vector<8x128xf32>
    %99 = arith.cmpf ogt, %97, %98 : vector<8x128xf32>
    %100 = arith.extui %99 : vector<8x128xi1> to vector<8x128xi32>
    %101 = arith.sitofp %100 : vector<8x128xi32> to vector<8x128xf32>
    %102 = arith.index_cast %c3_i32 : i32 to index
    %c0_41 = arith.constant 0 : index
    %c0_42 = arith.constant 0 : index
    %103 = vector.load %arg7[%102, %c0_41, %c0_42] : memref<8x8x128xf32, #tpu.memory_space<vmem>>, vector<1x8x128xf32>
    %104 = vector.shape_cast %103 : vector<1x8x128xf32> to vector<8x128xf32>
    %105 = vector.shape_cast %101 : vector<8x128xf32> to vector<1x8x128xf32>
    tpu.vector_store %arg7[%102, %c0_41, %c0_42], %105 {strides = array<i32>} : memref<8x8x128xf32, #tpu.memory_space<vmem>>, vector<1x8x128xf32>,
    %106 = arith.addf %83, %101 : vector<8x128xf32>
    %c4_i32 = arith.constant 4 : i32
    %cst_43 = arith.constant dense<0.000000e+00> : vector<8x128xf32>
    %107 = tpu.matmul %101, %6, %cst_43 {dimension_numbers = #tpu.dot_dimension_numbers<[1], [0], [0], [1], [0, 0, 1, 1], [], []>} : vector<8x128xf32>, vector<128x128xf32>, vector<8x128xf32> -> vector<8x128xf32>
    %108 = arith.subf %93, %107 : vector<8x128xf32>
    %109 = vector.broadcast %9 : vector<1x128xf32> to vector<8x128xf32>
    %110 = arith.mulf %108, %109 : vector<8x128xf32>
    %111 = arith.index_cast %c4_i32 : i32 to index
    %c0_44 = arith.constant 0 : index
    %c0_45 = arith.constant 0 : index
    %112 = vector.load %arg9[%111, %c0_44, %c0_45] : memref<8x8x128xf32, #tpu.memory_space<vmem>>, vector<1x8x128xf32>
    %113 = vector.shape_cast %112 : vector<1x8x128xf32> to vector<8x128xf32>
    %114 = vector.broadcast %11 : vector<1x128xf32> to vector<8x128xf32>
    %115 = arith.mulf %113, %114 : vector<8x128xf32>
    %116 = arith.addf %110, %115 : vector<8x128xf32>
    %117 = vector.broadcast %7 : vector<1x128xf32> to vector<8x128xf32>
    %118 = arith.mulf %116, %117 : vector<8x128xf32>
    %119 = vector.broadcast %8 : vector<1x128xf32> to vector<8x128xf32>
    %120 = arith.subf %118, %119 : vector<8x128xf32>
    %cst_46 = arith.constant 0.000000e+00 : f32
    %121 = vector.broadcast %cst_46 : f32 to vector<8x128xf32>
    %122 = arith.cmpf ogt, %120, %121 : vector<8x128xf32>
    %123 = arith.extui %122 : vector<8x128xi1> to vector<8x128xi32>
    %124 = arith.sitofp %123 : vector<8x128xi32> to vector<8x128xf32>
    %125 = arith.index_cast %c4_i32 : i32 to index
    %c0_47 = arith.constant 0 : index
    %c0_48 = arith.constant 0 : index
    %126 = vector.load %arg7[%125, %c0_47, %c0_48] : memref<8x8x128xf32, #tpu.memory_space<vmem>>, vector<1x8x128xf32>
    %127 = vector.shape_cast %126 : vector<1x8x128xf32> to vector<8x128xf32>
    %128 = vector.shape_cast %124 : vector<8x128xf32> to vector<1x8x128xf32>
    tpu.vector_store %arg7[%125, %c0_47, %c0_48], %128 {strides = array<i32>} : memref<8x8x128xf32, #tpu.memory_space<vmem>>, vector<1x8x128xf32>,
    %129 = arith.addf %106, %124 : vector<8x128xf32>
    %c5_i32 = arith.constant 5 : i32
    %cst_49 = arith.constant dense<0.000000e+00> : vector<8x128xf32>
    %130 = tpu.matmul %124, %6, %cst_49 {dimension_numbers = #tpu.dot_dimension_numbers<[1], [0], [0], [1], [0, 0, 1, 1], [], []>} : vector<8x128xf32>, vector<128x128xf32>, vector<8x128xf32> -> vector<8x128xf32>
    %131 = arith.subf %116, %130 : vector<8x128xf32>
    %132 = vector.broadcast %9 : vector<1x128xf32> to vector<8x128xf32>
    %133 = arith.mulf %131, %132 : vector<8x128xf32>
    %134 = arith.index_cast %c5_i32 : i32 to index
    %c0_50 = arith.constant 0 : index
    %c0_51 = arith.constant 0 : index
    %135 = vector.load %arg9[%134, %c0_50, %c0_51] : memref<8x8x128xf32, #tpu.memory_space<vmem>>, vector<1x8x128xf32>
    %136 = vector.shape_cast %135 : vector<1x8x128xf32> to vector<8x128xf32>
    %137 = vector.broadcast %11 : vector<1x128xf32> to vector<8x128xf32>
    %138 = arith.mulf %136, %137 : vector<8x128xf32>
    %139 = arith.addf %133, %138 : vector<8x128xf32>
    %140 = vector.broadcast %7 : vector<1x128xf32> to vector<8x128xf32>
    %141 = arith.mulf %139, %140 : vector<8x128xf32>
    %142 = vector.broadcast %8 : vector<1x128xf32> to vector<8x128xf32>
    %143 = arith.subf %141, %142 : vector<8x128xf32>
    %cst_52 = arith.constant 0.000000e+00 : f32
    %144 = vector.broadcast %cst_52 : f32 to vector<8x128xf32>
    %145 = arith.cmpf ogt, %143, %144 : vector<8x128xf32>
    %146 = arith.extui %145 : vector<8x128xi1> to vector<8x128xi32>
    %147 = arith.sitofp %146 : vector<8x128xi32> to vector<8x128xf32>
    %148 = arith.index_cast %c5_i32 : i32 to index
    %c0_53 = arith.constant 0 : index
    %c0_54 = arith.constant 0 : index
    %149 = vector.load %arg7[%148, %c0_53, %c0_54] : memref<8x8x128xf32, #tpu.memory_space<vmem>>, vector<1x8x128xf32>
    %150 = vector.shape_cast %149 : vector<1x8x128xf32> to vector<8x128xf32>
    %151 = vector.shape_cast %147 : vector<8x128xf32> to vector<1x8x128xf32>
    tpu.vector_store %arg7[%148, %c0_53, %c0_54], %151 {strides = array<i32>} : memref<8x8x128xf32, #tpu.memory_space<vmem>>, vector<1x8x128xf32>,
    %152 = arith.addf %129, %147 : vector<8x128xf32>
    %c6_i32 = arith.constant 6 : i32
    %cst_55 = arith.constant dense<0.000000e+00> : vector<8x128xf32>
    %153 = tpu.matmul %147, %6, %cst_55 {dimension_numbers = #tpu.dot_dimension_numbers<[1], [0], [0], [1], [0, 0, 1, 1], [], []>} : vector<8x128xf32>, vector<128x128xf32>, vector<8x128xf32> -> vector<8x128xf32>
    %154 = arith.subf %139, %153 : vector<8x128xf32>
    %155 = vector.broadcast %9 : vector<1x128xf32> to vector<8x128xf32>
    %156 = arith.mulf %154, %155 : vector<8x128xf32>
    %157 = arith.index_cast %c6_i32 : i32 to index
    %c0_56 = arith.constant 0 : index
    %c0_57 = arith.constant 0 : index
    %158 = vector.load %arg9[%157, %c0_56, %c0_57] : memref<8x8x128xf32, #tpu.memory_space<vmem>>, vector<1x8x128xf32>
    %159 = vector.shape_cast %158 : vector<1x8x128xf32> to vector<8x128xf32>
    %160 = vector.broadcast %11 : vector<1x128xf32> to vector<8x128xf32>
    %161 = arith.mulf %159, %160 : vector<8x128xf32>
    %162 = arith.addf %156, %161 : vector<8x128xf32>
    %163 = vector.broadcast %7 : vector<1x128xf32> to vector<8x128xf32>
    %164 = arith.mulf %162, %163 : vector<8x128xf32>
    %165 = vector.broadcast %8 : vector<1x128xf32> to vector<8x128xf32>
    %166 = arith.subf %164, %165 : vector<8x128xf32>
    %cst_58 = arith.constant 0.000000e+00 : f32
    %167 = vector.broadcast %cst_58 : f32 to vector<8x128xf32>
    %168 = arith.cmpf ogt, %166, %167 : vector<8x128xf32>
    %169 = arith.extui %168 : vector<8x128xi1> to vector<8x128xi32>
    %170 = arith.sitofp %169 : vector<8x128xi32> to vector<8x128xf32>
    %171 = arith.index_cast %c6_i32 : i32 to index
    %c0_59 = arith.constant 0 : index
    %c0_60 = arith.constant 0 : index
    %172 = vector.load %arg7[%171, %c0_59, %c0_60] : memref<8x8x128xf32, #tpu.memory_space<vmem>>, vector<1x8x128xf32>
    %173 = vector.shape_cast %172 : vector<1x8x128xf32> to vector<8x128xf32>
    %174 = vector.shape_cast %170 : vector<8x128xf32> to vector<1x8x128xf32>
    tpu.vector_store %arg7[%171, %c0_59, %c0_60], %174 {strides = array<i32>} : memref<8x8x128xf32, #tpu.memory_space<vmem>>, vector<1x8x128xf32>,
    %175 = arith.addf %152, %170 : vector<8x128xf32>
    %c7_i32 = arith.constant 7 : i32
    %cst_61 = arith.constant dense<0.000000e+00> : vector<8x128xf32>
    %176 = tpu.matmul %170, %6, %cst_61 {dimension_numbers = #tpu.dot_dimension_numbers<[1], [0], [0], [1], [0, 0, 1, 1], [], []>} : vector<8x128xf32>, vector<128x128xf32>, vector<8x128xf32> -> vector<8x128xf32>
    %177 = arith.subf %162, %176 : vector<8x128xf32>
    %178 = vector.broadcast %9 : vector<1x128xf32> to vector<8x128xf32>
    %179 = arith.mulf %177, %178 : vector<8x128xf32>
    %180 = arith.index_cast %c7_i32 : i32 to index
    %c0_62 = arith.constant 0 : index
    %c0_63 = arith.constant 0 : index
    %181 = vector.load %arg9[%180, %c0_62, %c0_63] : memref<8x8x128xf32, #tpu.memory_space<vmem>>, vector<1x8x128xf32>
    %182 = vector.shape_cast %181 : vector<1x8x128xf32> to vector<8x128xf32>
    %183 = vector.broadcast %11 : vector<1x128xf32> to vector<8x128xf32>
    %184 = arith.mulf %182, %183 : vector<8x128xf32>
    %185 = arith.addf %179, %184 : vector<8x128xf32>
    %186 = vector.broadcast %7 : vector<1x128xf32> to vector<8x128xf32>
    %187 = arith.mulf %185, %186 : vector<8x128xf32>
    %188 = vector.broadcast %8 : vector<1x128xf32> to vector<8x128xf32>
    %189 = arith.subf %187, %188 : vector<8x128xf32>
    %cst_64 = arith.constant 0.000000e+00 : f32
    %190 = vector.broadcast %cst_64 : f32 to vector<8x128xf32>
    %191 = arith.cmpf ogt, %189, %190 : vector<8x128xf32>
    %192 = arith.extui %191 : vector<8x128xi1> to vector<8x128xi32>
    %193 = arith.sitofp %192 : vector<8x128xi32> to vector<8x128xf32>
    %194 = arith.index_cast %c7_i32 : i32 to index
    %c0_65 = arith.constant 0 : index
    %c0_66 = arith.constant 0 : index
    %195 = vector.load %arg7[%194, %c0_65, %c0_66] : memref<8x8x128xf32, #tpu.memory_space<vmem>>, vector<1x8x128xf32>
    %196 = vector.shape_cast %195 : vector<1x8x128xf32> to vector<8x128xf32>
    %197 = vector.shape_cast %193 : vector<8x128xf32> to vector<1x8x128xf32>
    tpu.vector_store %arg7[%194, %c0_65, %c0_66], %197 {strides = array<i32>} : memref<8x8x128xf32, #tpu.memory_space<vmem>>, vector<1x8x128xf32>,
    %198 = arith.addf %175, %193 : vector<8x128xf32>
    %c8_i32 = arith.constant 8 : i32
    %199 = vector.shape_cast %198 : vector<8x128xf32> to vector<1x8x128xf32>
    %cst_67 = arith.constant dense<0.000000e+00> : vector<1xf32>
    %200 = vector.multi_reduction <add>, %199, %cst_67 [1, 2] : vector<1x8x128xf32> to vector<1xf32>
    %201 = vector.shape_cast %200 : vector<1xf32> to vector<1x1x1xf32>
    %202 = vector.extract %201[0, 0, 0] : f32 from vector<1x1x1xf32>
    %203 = vector.broadcast %202 : f32 to vector<1x8x128xf32>
    %c0_68 = arith.constant 0 : index
    %c0_69 = arith.constant 0 : index
    %c0_70 = arith.constant 0 : index
    %204 = vector.load %arg8[%c0_68, %c0_69, %c0_70] : memref<1x8x128xf32, #tpu.memory_space<vmem>>, vector<1x8x128xf32>
    tpu.vector_store %arg8[%c0_68, %c0_69, %c0_70], %203 {strides = array<i32>} : memref<1x8x128xf32, #tpu.memory_space<vmem>>, vector<1x8x128xf32>,
    return
  }
  func.func @transform_0(%arg0: i32) -> (i32, i32, i32) {
    %c0_i32 = arith.constant 0 : i32
    %c0_i32_0 = arith.constant 0 : i32
    %c0_i32_1 = arith.constant 0 : i32
    return %c0_i32, %arg0, %c0_i32_0 : i32, i32, i32
  }
  func.func @transform_1(%arg0: i32) -> (i32, i32) {
    %c0_i32 = arith.constant 0 : i32
    %c0_i32_0 = arith.constant 0 : i32
    %c0_i32_1 = arith.constant 0 : i32
    return %c0_i32, %c0_i32_0 : i32, i32
  }
  func.func @transform_2(%arg0: i32) -> (i32, i32) {
    %c0_i32 = arith.constant 0 : i32
    %c0_i32_0 = arith.constant 0 : i32
    %c0_i32_1 = arith.constant 0 : i32
    return %c0_i32, %c0_i32_0 : i32, i32
  }
  func.func @transform_3(%arg0: i32) -> (i32, i32) {
    %c0_i32 = arith.constant 0 : i32
    %c0_i32_0 = arith.constant 0 : i32
    %c0_i32_1 = arith.constant 0 : i32
    return %c0_i32, %c0_i32_0 : i32, i32
  }
  func.func @transform_4(%arg0: i32) -> (i32, i32) {
    %c0_i32 = arith.constant 0 : i32
    %c0_i32_0 = arith.constant 0 : i32
    %c0_i32_1 = arith.constant 0 : i32
    return %c0_i32, %c0_i32_0 : i32, i32
  }
  func.func @transform_5(%arg0: i32) -> (i32, i32) {
    %c0_i32 = arith.constant 0 : i32
    %c0_i32_0 = arith.constant 0 : i32
    %c0_i32_1 = arith.constant 0 : i32
    return %c0_i32, %c0_i32_0 : i32, i32
  }
  func.func @transform_6(%arg0: i32) -> (i32, i32, i32) {
    %c0_i32 = arith.constant 0 : i32
    %c0_i32_0 = arith.constant 0 : i32
    %c0_i32_1 = arith.constant 0 : i32
    return %c0_i32, %arg0, %c0_i32_0 : i32, i32, i32
  }
  func.func @transform_7(%arg0: i32) -> (i32, i32, i32) {
    %c0_i32 = arith.constant 0 : i32
    %c0_i32_0 = arith.constant 0 : i32
    %c0_i32_1 = arith.constant 0 : i32
    return %arg0, %c0_i32, %c0_i32_0 : i32, i32, i32
  }
}

</mosaic_0001>

<llo_original>
// kernel: spiking_dense_forward.1
$region0: #{spiking_dense_forward.1}
  #allocation0 [shape = 'u32[]', space=smem, size = 0x4, offset = 0x4, fixed_abs, tag = 'smem constant byte address 0x4 - core index']
  #allocation1 [shape = 'u32[144,128]{1,0:T(1,128)}', space=vmem, size = 0x12000, scoped, tag = 'internal scratch']
  #allocation2 [shape = 'f32[8,8,128]{2,1,0:T(8,128)}', space=vmem, size = 0x8000, scoped, tag = 'scratch operand']
  %s0 = inlined_call_operand.vmem [shape: f32[8,8,32], index: 0, kind: input, shape index: {}]
  %s1 = inlined_call_operand.vmem [shape: f32[32,128], index: 1, kind: input, shape index: {}]
  %s2 = inlined_call_operand.vmem [shape: f32[128,128], index: 2, kind: input, shape index: {}]
  %s3 = inlined_call_operand.vmem [shape: f32[1,128], index: 3, kind: input, shape index: {}]
  %s4 = inlined_call_operand.vmem [shape: f32[1,128], index: 4, kind: input, shape index: {}]
  %s5 = inlined_call_operand.vmem [shape: f32[1,128], index: 5, kind: input, shape index: {}]
  %s6 = inlined_call_operand.vmem [shape: f32[8,8,128], index: 6, kind: output, shape index: {0}]
  %s7 = inlined_call_operand.vmem [shape: f32[1,8,128], index: 7, kind: output, shape index: {1}]
  %8 = xla_tuple %s6, %s7
  %s9 = sld [smem:[#allocation0]]
  $region42: #{spiking_dense_forward.1} parent=0
    _
  %s11 = ssub.s32 1, %s9
  %s12 = scalar_select 0, %s11, %s9
  // Predicated region
  $region2: #{spiking_dense_forward.1} parent=0 // pred_check
    _
  $region3: #{spiking_dense_forward.1} parent=0 // pred_check_branch
    %14 = sbr.rel (0) target = $region5
  $region4: #{spiking_dense_forward.1} parent=0 // pred_region
    _
  $region5: #{spiking_dense_forward.1} parent=0 // pred_fallthru
    _
  // Predicated region
  $region6: #{spiking_dense_forward.1} parent=0 // pred_check
    _
  $region7: #{spiking_dense_forward.1} parent=0 // pred_check_branch
    %16 = sbr.rel (0) target = $region9
  $region8: #{spiking_dense_forward.1} parent=0 // pred_region
    _
  $region9: #{spiking_dense_forward.1} parent=0 // pred_fallthru
    _
  // Predicated region
  $region10: #{spiking_dense_forward.1} parent=0 // pred_check
    _
  $region11: #{spiking_dense_forward.1} parent=0 // pred_check_branch
    %18 = sbr.rel (0) target = $region13
  $region12: #{spiking_dense_forward.1} parent=0 // pred_region
    _
  $region13: #{spiking_dense_forward.1} parent=0 // pred_fallthru
    _
  // Predicated region
  $region14: #{spiking_dense_forward.1} parent=0 // pred_check
    _
  $region15: #{spiking_dense_forward.1} parent=0 // pred_check_branch
    %20 = sbr.rel (0) target = $region17
  $region16: #{spiking_dense_forward.1} parent=0 // pred_region
    _
  $region17: #{spiking_dense_forward.1} parent=0 // pred_fallthru
    _
  // Predicated region
  $region18: #{spiking_dense_forward.1} parent=0 // pred_check
    _
  $region19: #{spiking_dense_forward.1} parent=0 // pred_check_branch
    %22 = sbr.rel (0) target = $region21
  $region20: #{spiking_dense_forward.1} parent=0 // pred_region
    _
  $region21: #{spiking_dense_forward.1} parent=0 // pred_fallthru
    _
  // Predicated region
  $region22: #{spiking_dense_forward.1} parent=0 // pred_check
    _
  $region23: #{spiking_dense_forward.1} parent=0 // pred_check_branch
    %24 = sbr.rel (0) target = $region25
  $region24: #{spiking_dense_forward.1} parent=0 // pred_region
    _
  $region25: #{spiking_dense_forward.1} parent=0 // pred_fallthru
    _
  %v25 = vld [vmem:[%s0] sm:$0xff]
  %v26 = vld [vmem:[%s0 + $0x8] sm:$0xff]
  %v27 = vld [vmem:[%s0 + $0x10] sm:$0xff]
  %v28 = vld [vmem:[%s0 + $0x18] sm:$0xff]
  %v29 = vld [vmem:[%s0 + $0x20] sm:$0xff]
  %v30 = vld [vmem:[%s0 + $0x28] sm:$0xff]
  %v31 = vld [vmem:[%s0 + $0x30] sm:$0xff]
  %v32 = vld [vmem:[%s0 + $0x38] sm:$0xff]
  %v33 = vld [vmem:[%s1] sm:$0xff]
  %v34 = vld [vmem:[%s1 + $0x8] sm:$0xff]
  %v35 = vld [vmem:[%s1 + $0x10] sm:$0xff]
  %v36 = vld [vmem:[%s1 + $0x18] sm:$0xff]
  %vm37 = vcmask 261120
  %v39 = vsel %vm37, %v25, 0
  %v42 = vsel %vm37, %v26, 0
  %v45 = vsel %vm37, %v27, 0
  %v48 = vsel %vm37, %v28, 0
  %v51 = vsel %vm37, %v29, 0
  %v54 = vsel %vm37, %v30, 0
  %v57 = vsel %vm37, %v31, 0
  %v60 = vsel %vm37, %v32, 0
  %62 = vmatprep.subr.mxu0 0.0
  %63 = vmatpush1.msra.mxu0 %v33
  %64 = vmatprep.subr.mxu0 0.0
  %65 = vmatpush1.msra.mxu0 %v34
  %66 = vmatprep.subr.mxu0 0.0
  %67 = vmatpush1.msra.mxu0 %v35
  %68 = vmatprep.subr.mxu0 0.0
  %69 = vmatpush1.msra.mxu0 %v36
  %70 = vmatprep.subr.mxu0 0.0
  %71 = vmatpush1.msra.mxu0 0.0
  %72 = vmatprep.subr.mxu0 0.0
  %73 = vmatpush1.msra.mxu0 0.0
  %74 = vmatprep.subr.mxu0 0.0
  %75 = vmatpush1.msra.mxu0 0.0
  %76 = vmatprep.subr.mxu0 0.0
  %77 = vmatpush1.msra.mxu0 0.0
  %78 = vmatprep.subr.mxu0 0.0
  %79 = vmatpush1.msra.mxu0 0.0
  %80 = vmatprep.subr.mxu0 0.0
  %81 = vmatpush1.msra.mxu0 0.0
  %82 = vmatprep.subr.mxu0 0.0
  %83 = vmatpush1.msra.mxu0 0.0
  %84 = vmatprep.subr.mxu0 0.0
  %85 = vmatpush1.msra.mxu0 0.0
  %86 = vmatprep.subr.mxu0 0.0
  %87 = vmatpush1.msra.mxu0 0.0
  %88 = vmatprep.subr.mxu0 0.0
  %89 = vmatpush1.msra.mxu0 0.0
  %90 = vmatprep.subr.mxu0 0.0
  %91 = vmatpush1.msra.mxu0 0.0
  %92 = vmatprep.subr.mxu0 0.0
  %93 = vmatpush1.msra.mxu0 0.0
  %94 = vmatprep.subr.mxu0 0.0
  %95 = vmatpush1.msra.mxu0 0.0
  %96 = vmatprep.subr.mxu0 0.0
  %97 = vmatpush1.msra.mxu0 0.0
  %98 = vmatprep.subr.mxu0 0.0
  %99 = vmatpush1.msra.mxu0 0.0
  %100 = vmatprep.subr.mxu0 0.0
  %101 = vmatpush1.msra.mxu0 0.0
  %102 = vmatprep.subr.mxu0 0.0
  %103 = vmatpush1.msra.mxu0 0.0
  %104 = vmatprep.subr.mxu0 0.0
  %105 = vmatpush1.msra.mxu0 0.0
  %106 = vmatprep.subr.mxu0 0.0
  %107 = vmatpush1.msra.mxu0 0.0
  %108 = vmatprep.subr.mxu0 0.0
  %109 = vmatpush1.msra.mxu0 0.0
  %110 = vmatprep.subr.mxu0 0.0
  %111 = vmatpush1.msra.mxu0 0.0
  %112 = vmatprep.subr.mxu0 0.0
  %113 = vmatpush1.msra.mxu0 0.0
  %114 = vmatprep.subr.mxu0 0.0
  %115 = vmatpush1.msra.mxu0 0.0
  %116 = vmatprep.subr.mxu0 0.0
  %117 = vmatpush1.msra.mxu0 0.0
  %118 = vmatprep.subr.mxu0 0.0
  %119 = vmatpush1.msra.mxu0 0.0
  %120 = vmatprep.subr.mxu0 0.0
  %121 = vmatpush1.msra.mxu0 0.0
  %122 = vmatprep.subr.mxu0 0.0
  %123 = vmatpush1.msra.mxu0 0.0
  %124 = vmatprep.subr.mxu0 0.0
  %125 = vmatpush1.msra.mxu0 0.0
  %126 = vmatprep.mubr.f32.mxu0 0.0
  %127 = vmatmul.mubr.f32.gmra.mrb[0].mxu0 %v39
  %v128 = vpop.f32.mrb[0].mxu0
  %v129 = vadd.f32 0.0, %v128
  %v130 = vpop.f32.mrb[0].mxu0
  %131 = vmatprep.mubr.f32.mxu0 0.0
  %132 = vmatmul.mubr.f32.gmra.mrb[0].mxu0 %v42
  %v133 = vpop.f32.mrb[0].mxu0
  %v134 = vadd.f32 0.0, %v133
  %v135 = vpop.f32.mrb[0].mxu0
  %136 = vmatprep.mubr.f32.mxu0 0.0
  %137 = vmatmul.mubr.f32.gmra.mrb[0].mxu0 %v45
  %v138 = vpop.f32.mrb[0].mxu0
  %v139 = vadd.f32 0.0, %v138
  %v140 = vpop.f32.mrb[0].mxu0
  %141 = vmatprep.mubr.f32.mxu0 0.0
  %142 = vmatmul.mubr.f32.gmra.mrb[0].mxu0 %v48
  %v143 = vpop.f32.mrb[0].mxu0
  %v144 = vadd.f32 0.0, %v143
  %v145 = vpop.f32.mrb[0].mxu0
  %146 = vmatprep.mubr.f32.mxu0 0.0
  %147 = vmatmul.mubr.f32.gmra.mrb[0].mxu0 %v51
  %v148 = vpop.f32.mrb[0].mxu0
  %v149 = vadd.f32 0.0, %v148
  %v150 = vpop.f32.mrb[0].mxu0
  %151 = vmatprep.mubr.f32.mxu0 0.0
  %152 = vmatmul.mubr.f32.gmra.mrb[0].mxu0 %v54
  %v153 = vpop.f32.mrb[0].mxu0
  %v154 = vadd.f32 0.0, %v153
  %v155 = vpop.f32.mrb[0].mxu0
  %156 = vmatprep.mubr.f32.mxu0 0.0
  %157 = vmatmul.mubr.f32.gmra.mrb[0].mxu0 %v57
  %v158 = vpop.f32.mrb[0].mxu0
  %v159 = vadd.f32 0.0, %v158
  %v160 = vpop.f32.mrb[0].mxu0
  %161 = vmatprep.mubr.f32.mxu0 0.0
  %162 = vmatmul.mubr.f32.gmra.mrb[0].mxu0 %v60
  %v163 = vpop.f32.mrb[0].mxu0
  %v164 = vadd.f32 0.0, %v163
  %v165 = vpop.f32.mrb[0].mxu0
  %166 = vdwg.mxu0
  %167 = vst [vmem:[#allocation2] sm:$0xff] %v129
  %168 = vst [vmem:[#allocation2 + $0x8] sm:$0xff] %v134
  %169 = vst [vmem:[#allocation2 + $0x10] sm:$0xff] %v139
  %170 = vst [vmem:[#allocation2 + $0x18] sm:$0xff] %v144
  %171 = vst [vmem:[#allocation2 + $0x20] sm:$0xff] %v149
  %172 = vst [vmem:[#allocation2 + $0x28] sm:$0xff] %v154
  %173 = vst [vmem:[#allocation2 + $0x30] sm:$0xff] %v159
  %174 = vst [vmem:[#allocation2 + $0x38] sm:$0xff] %v164
  %v175 = vld [vmem:[%s2] sm:$0xff]
  %v176 = vld [vmem:[%s2 + $0x8] sm:$0xff]
  %v177 = vld [vmem:[%s2 + $0x10] sm:$0xff]
  %v178 = vld [vmem:[%s2 + $0x18] sm:$0xff]
  %v179 = vld [vmem:[%s2 + $0x20] sm:$0xff]
  %v180 = vld [vmem:[%s2 + $0x28] sm:$0xff]
  %v181 = vld [vmem:[%s2 + $0x30] sm:$0xff]
  %v182 = vld [vmem:[%s2 + $0x38] sm:$0xff]
  %v183 = vld [vmem:[%s2 + $0x40] sm:$0xff]
  %v184 = vld [vmem:[%s2 + $0x48] sm:$0xff]
  %v185 = vld [vmem:[%s2 + $0x50] sm:$0xff]
  %v186 = vld [vmem:[%s2 + $0x58] sm:$0xff]
  %v187 = vld [vmem:[%s2 + $0x60] sm:$0xff]
  %v188 = vld [vmem:[%s2 + $0x68] sm:$0xff]
  %v189 = vld [vmem:[%s2 + $0x70] sm:$0xff]
  %v190 = vld [vmem:[%s2 + $0x78] sm:$0xff]
  %v191 = vld [vmem:[%s3] sm:$0x1]
  %v192 = vld [vmem:[%s4] sm:$0x1]
  %v193 = vld [vmem:[%s5] sm:$0x1]
  %v194 = vsub.f32 1.0, %v193
  %195 = vmatprep.subr.mxu0 0.0
  %196 = vmatpush1.msra.mxu0 %v175
  %197 = vmatprep.subr.mxu0 0.0
  %198 = vmatpush1.msra.mxu0 %v176
  %199 = vmatprep.subr.mxu0 0.0
  %200 = vmatpush1.msra.mxu0 %v177
  %201 = vmatprep.subr.mxu0 0.0
  %202 = vmatpush1.msra.mxu0 %v178
  %203 = vmatprep.subr.mxu0 0.0
  %204 = vmatpush1.msra.mxu0 %v179
  %205 = vmatprep.subr.mxu0 0.0
  %206 = vmatpush1.msra.mxu0 %v180
  %207 = vmatprep.subr.mxu0 0.0
  %208 = vmatpush1.msra.mxu0 %v181
  %209 = vmatprep.subr.mxu0 0.0
  %210 = vmatpush1.msra.mxu0 %v182
  %211 = vmatprep.subr.mxu0 0.0
  %212 = vmatpush1.msra.mxu0 %v183
  %213 = vmatprep.subr.mxu0 0.0
  %214 = vmatpush1.msra.mxu0 %v184
  %215 = vmatprep.subr.mxu0 0.0
  %216 = vmatpush1.msra.mxu0 %v185
  %217 = vmatprep.subr.mxu0 0.0
  %218 = vmatpush1.msra.mxu0 %v186
  %219 = vmatprep.subr.mxu0 0.0
  %220 = vmatpush1.msra.mxu0 %v187
  %221 = vmatprep.subr.mxu0 0.0
  %222 = vmatpush1.msra.mxu0 %v188
  %223 = vmatprep.subr.mxu0 0.0
  %224 = vmatpush1.msra.mxu0 %v189
  %225 = vmatprep.subr.mxu0 0.0
  %226 = vmatpush1.msra.mxu0 %v190
  %227 = vmatprep.subr.mxu0 0.0
  %228 = vmatpush1.msra.mxu0 0.0
  %229 = vmatprep.subr.mxu0 0.0
  %230 = vmatpush1.msra.mxu0 0.0
  %231 = vmatprep.subr.mxu0 0.0
  %232 = vmatpush1.msra.mxu0 0.0
  %233 = vmatprep.subr.mxu0 0.0
  %234 = vmatpush1.msra.mxu0 0.0
  %235 = vmatprep.subr.mxu0 0.0
  %236 = vmatpush1.msra.mxu0 0.0
  %237 = vmatprep.subr.mxu0 0.0
  %238 = vmatpush1.msra.mxu0 0.0
  %239 = vmatprep.subr.mxu0 0.0
  %240 = vmatpush1.msra.mxu0 0.0
  %241 = vmatprep.subr.mxu0 0.0
  %242 = vmatpush1.msra.mxu0 0.0
  %243 = vmatprep.subr.mxu0 0.0
  %244 = vmatpush1.msra.mxu0 0.0
  %245 = vmatprep.subr.mxu0 0.0
  %246 = vmatpush1.msra.mxu0 0.0
  %247 = vmatprep.subr.mxu0 0.0
  %248 = vmatpush1.msra.mxu0 0.0
  %249 = vmatprep.subr.mxu0 0.0
  %250 = vmatpush1.msra.mxu0 0.0
  %251 = vmatprep.subr.mxu0 0.0
  %252 = vmatpush1.msra.mxu0 0.0
  %253 = vmatprep.subr.mxu0 0.0
  %254 = vmatpush1.msra.mxu0 0.0
  %255 = vmatprep.subr.mxu0 0.0
  %256 = vmatpush1.msra.mxu0 0.0
  %257 = vmatprep.subr.mxu0 0.0
  %258 = vmatpush1.msra.mxu0 0.0
  %259 = vmatprep.mubr.f32.mxu0 0.0
  %260 = vmatmul.mubr.f32.gmra.mrb[0].mxu0 0.0
  %v261 = vpop.f32.mrb[0].mxu0
  %v262 = vadd.f32 0.0, %v261
  %v263 = vpop.f32.mrb[0].mxu0
  %264 = vdwg.mxu0
  %v265 = vsub.f32 0.0, %v262
  %v267 = vlaneseq
  %v268 = vshrl.u32 %v267, 7
  %v269 = vsub.s32 0, %v268
  %v270 = vrot.slane %v193, %v269
  %v272 = vmul.f32 %v265, %v270
  %v273 = vld [vmem:[#allocation2] sm:$0xff]
  %v275 = vlaneseq
  %v276 = vshrl.u32 %v275, 7
  %v277 = vsub.s32 0, %v276
  %v278 = vrot.slane %v194, %v277
  %v280 = vmul.f32 %v273, %v278
  %v281 = vadd.f32 %v272, %v280
  %v283 = vlaneseq
  %v284 = vshrl.u32 %v283, 7
  %v285 = vsub.s32 0, %v284
  %v286 = vrot.slane %v191, %v285
  %v288 = vmul.f32 %v281, %v286
  %v290 = vlaneseq
  %v291 = vshrl.u32 %v290, 7
  %v292 = vsub.s32 0, %v291
  %v293 = vrot.slane %v192, %v292
  %v295 = vsub.f32 %v288, %v293
  %vm296 = vcmp.gt.f32.partialorder %v295, 0.0
  %v297 = vsel %vm296, 1, 0
  %v298 = vcvt.s32.f32 %v297
  %299 = vst [vmem:[%s6] sm:$0xff] %v298
  %v300 = vadd.f32 %v298, 0.0
  %301 = vmatprep.subr.mxu0 0.0
  %302 = vmatpush1.msra.mxu0 %v175
  %303 = vmatprep.subr.mxu0 0.0
  %304 = vmatpush1.msra.mxu0 %v176
  %305 = vmatprep.subr.mxu0 0.0
  %306 = vmatpush1.msra.mxu0 %v177
  %307 = vmatprep.subr.mxu0 0.0
  %308 = vmatpush1.msra.mxu0 %v178
  %309 = vmatprep.subr.mxu0 0.0
  %310 = vmatpush1.msra.mxu0 %v179
  %311 = vmatprep.subr.mxu0 0.0
  %312 = vmatpush1.msra.mxu0 %v180
  %313 = vmatprep.subr.mxu0 0.0
  %314 = vmatpush1.msra.mxu0 %v181
  %315 = vmatprep.subr.mxu0 0.0
  %316 = vmatpush1.msra.mxu0 %v182
  %317 = vmatprep.subr.mxu0 0.0
  %318 = vmatpush1.msra.mxu0 %v183
  %319 = vmatprep.subr.mxu0 0.0
  %320 = vmatpush1.msra.mxu0 %v184
  %321 = vmatprep.subr.mxu0 0.0
  %322 = vmatpush1.msra.mxu0 %v185
  %323 = vmatprep.subr.mxu0 0.0
  %324 = vmatpush1.msra.mxu0 %v186
  %325 = vmatprep.subr.mxu0 0.0
  %326 = vmatpush1.msra.mxu0 %v187
  %327 = vmatprep.subr.mxu0 0.0
  %328 = vmatpush1.msra.mxu0 %v188
  %329 = vmatprep.subr.mxu0 0.0
  %330 = vmatpush1.msra.mxu0 %v189
  %331 = vmatprep.subr.mxu0 0.0
  %332 = vmatpush1.msra.mxu0 %v190
  %333 = vmatprep.subr.mxu0 0.0
  %334 = vmatpush1.msra.mxu0 0.0
  %335 = vmatprep.subr.mxu0 0.0
  %336 = vmatpush1.msra.mxu0 0.0
  %337 = vmatprep.subr.mxu0 0.0
  %338 = vmatpush1.msra.mxu0 0.0
  %339 = vmatprep.subr.mxu0 0.0
  %340 = vmatpush1.msra.mxu0 0.0
  %341 = vmatprep.subr.mxu0 0.0
  %342 = vmatpush1.msra.mxu0 0.0
  %343 = vmatprep.subr.mxu0 0.0
  %344 = vmatpush1.msra.mxu0 0.0
  %345 = vmatprep.subr.mxu0 0.0
  %346 = vmatpush1.msra.mxu0 0.0
  %347 = vmatprep.subr.mxu0 0.0
  %348 = vmatpush1.msra.mxu0 0.0
  %349 = vmatprep.subr.mxu0 0.0
  %350 = vmatpush1.msra.mxu0 0.0
  %351 = vmatprep.subr.mxu0 0.0
  %352 = vmatpush1.msra.mxu0 0.0
  %353 = vmatprep.subr.mxu0 0.0
  %354 = vmatpush1.msra.mxu0 0.0
  %355 = vmatprep.subr.mxu0 0.0
  %356 = vmatpush1.msra.mxu0 0.0
  %357 = vmatprep.subr.mxu0 0.0
  %358 = vmatpush1.msra.mxu0 0.0
  %359 = vmatprep.subr.mxu0 0.0
  %360 = vmatpush1.msra.mxu0 0.0
  %361 = vmatprep.subr.mxu0 0.0
  %362 = vmatpush1.msra.mxu0 0.0
  %363 = vmatprep.subr.mxu0 0.0
  %364 = vmatpush1.msra.mxu0 0.0
  %365 = vmatprep.mubr.f32.mxu0 0.0
  %366 = vmatmul.mubr.f32.gmra.mrb[0].mxu0 %v298
  %v367 = vpop.f32.mrb[0].mxu0
  %v368 = vadd.f32 0.0, %v367
  %v369 = vpop.f32.mrb[0].mxu0
  %370 = vdwg.mxu0
  %v371 = vsub.f32 %v281, %v368
  %v372 = vmul.f32 %v371, %v270
  %s373 = scalar_lea.vmem [#allocation2], 8
  %v374 = vld [vmem:[%s373] sm:$0xff]
  %v375 = vmul.f32 %v374, %v278
  %v376 = vadd.f32 %v372, %v375
  %v377 = vmul.f32 %v376, %v286
  %v378 = vsub.f32 %v377, %v293
  %vm379 = vcmp.gt.f32.partialorder %v378, 0.0
  %v380 = vsel %vm379, 1, 0
  %v381 = vcvt.s32.f32 %v380
  %s382 = scalar_lea.vmem %s6, 8
  %383 = vst [vmem:[%s382] sm:$0xff] %v381
  %v384 = vadd.f32 %v300, %v381
  %385 = vmatprep.subr.mxu0 0.0
  %386 = vmatpush1.msra.mxu0 %v175
  %387 = vmatprep.subr.mxu0 0.0
  %388 = vmatpush1.msra.mxu0 %v176
  %389 = vmatprep.subr.mxu0 0.0
  %390 = vmatpush1.msra.mxu0 %v177
  %391 = vmatprep.subr.mxu0 0.0
  %392 = vmatpush1.msra.mxu0 %v178
  %393 = vmatprep.subr.mxu0 0.0
  %394 = vmatpush1.msra.mxu0 %v179
  %395 = vmatprep.subr.mxu0 0.0
  %396 = vmatpush1.msra.mxu0 %v180
  %397 = vmatprep.subr.mxu0 0.0
  %398 = vmatpush1.msra.mxu0 %v181
  %399 = vmatprep.subr.mxu0 0.0
  %400 = vmatpush1.msra.mxu0 %v182
  %401 = vmatprep.subr.mxu0 0.0
  %402 = vmatpush1.msra.mxu0 %v183
  %403 = vmatprep.subr.mxu0 0.0
  %404 = vmatpush1.msra.mxu0 %v184
  %405 = vmatprep.subr.mxu0 0.0
  %406 = vmatpush1.msra.mxu0 %v185
  %407 = vmatprep.subr.mxu0 0.0
  %408 = vmatpush1.msra.mxu0 %v186
  %409 = vmatprep.subr.mxu0 0.0
  %410 = vmatpush1.msra.mxu0 %v187
  %411 = vmatprep.subr.mxu0 0.0
  %412 = vmatpush1.msra.mxu0 %v188
  %413 = vmatprep.subr.mxu0 0.0
  %414 = vmatpush1.msra.mxu0 %v189
  %415 = vmatprep.subr.mxu0 0.0
  %416 = vmatpush1.msra.mxu0 %v190
  %417 = vmatprep.subr.mxu0 0.0
  %418 = vmatpush1.msra.mxu0 0.0
  %419 = vmatprep.subr.mxu0 0.0
  %420 = vmatpush1.msra.mxu0 0.0
  %421 = vmatprep.subr.mxu0 0.0
  %422 = vmatpush1.msra.mxu0 0.0
  %423 = vmatprep.subr.mxu0 0.0
  %424 = vmatpush1.msra.mxu0 0.0
  %425 = vmatprep.subr.mxu0 0.0
  %426 = vmatpush1.msra.mxu0 0.0
  %427 = vmatprep.subr.mxu0 0.0
  %428 = vmatpush1.msra.mxu0 0.0
  %429 = vmatprep.subr.mxu0 0.0
  %430 = vmatpush1.msra.mxu0 0.0
  %431 = vmatprep.subr.mxu0 0.0
  %432 = vmatpush1.msra.mxu0 0.0
  %433 = vmatprep.subr.mxu0 0.0
  %434 = vmatpush1.msra.mxu0 0.0
  %435 = vmatprep.subr.mxu0 0.0
  %436 = vmatpush1.msra.mxu0 0.0
  %437 = vmatprep.subr.mxu0 0.0
  %438 = vmatpush1.msra.mxu0 0.0
  %439 = vmatprep.subr.mxu0 0.0
  %440 = vmatpush1.msra.mxu0 0.0
  %441 = vmatprep.subr.mxu0 0.0
  %442 = vmatpush1.msra.mxu0 0.0
  %443 = vmatprep.subr.mxu0 0.0
  %444 = vmatpush1.msra.mxu0 0.0
  %445 = vmatprep.subr.mxu0 0.0
  %446 = vmatpush1.msra.mxu0 0.0
  %447 = vmatprep.subr.mxu0 0.0
  %448 = vmatpush1.msra.mxu0 0.0
  %449 = vmatprep.mubr.f32.mxu0 0.0
  %450 = vmatmul.mubr.f32.gmra.mrb[0].mxu0 %v381
  %v451 = vpop.f32.mrb[0].mxu0
  %v452 = vadd.f32 0.0, %v451
  %v453 = vpop.f32.mrb[0].mxu0
  %454 = vdwg.mxu0
  %v455 = vsub.f32 %v376, %v452
  %v456 = vmul.f32 %v455, %v270
  %s457 = scalar_lea.vmem [#allocation2], 16
  %v458 = vld [vmem:[%s457] sm:$0xff]
  %v459 = vmul.f32 %v458, %v278
  %v460 = vadd.f32 %v456, %v459
  %v461 = vmul.f32 %v460, %v286
  %v462 = vsub.f32 %v461, %v293
  %vm463 = vcmp.gt.f32.partialorder %v462, 0.0
  %v464 = vsel %vm463, 1, 0
  %v465 = vcvt.s32.f32 %v464
  %s466 = scalar_lea.vmem %s6, 16
  %467 = vst [vmem:[%s466] sm:$0xff] %v465
  %v468 = vadd.f32 %v384, %v465
  %469 = vmatprep.subr.mxu0 0.0
  %470 = vmatpush1.msra.mxu0 %v175
  %471 = vmatprep.subr.mxu0 0.0
  %472 = vmatpush1.msra.mxu0 %v176
  %473 = vmatprep.subr.mxu0 0.0
  %474 = vmatpush1.msra.mxu0 %v177
  %475 = vmatprep.subr.mxu0 0.0
  %476 = vmatpush1.msra.mxu0 %v178
  %477 = vmatprep.subr.mxu0 0.0
  %478 = vmatpush1.msra.mxu0 %v179
  %479 = vmatprep.subr.mxu0 0.0
  %480 = vmatpush1.msra.mxu0 %v180
  %481 = vmatprep.subr.mxu0 0.0
  %482 = vmatpush1.msra.mxu0 %v181
  %483 = vmatprep.subr.mxu0 0.0
  %484 = vmatpush1.msra.mxu0 %v182
  %485 = vmatprep.subr.mxu0 0.0
  %486 = vmatpush1.msra.mxu0 %v183
  %487 = vmatprep.subr.mxu0 0.0
  %488 = vmatpush1.msra.mxu0 %v184
  %489 = vmatprep.subr.mxu0 0.0
  %490 = vmatpush1.msra.mxu0 %v185
  %491 = vmatprep.subr.mxu0 0.0
  %492 = vmatpush1.msra.mxu0 %v186
  %493 = vmatprep.subr.mxu0 0.0
  %494 = vmatpush1.msra.mxu0 %v187
  %495 = vmatprep.subr.mxu0 0.0
  %496 = vmatpush1.msra.mxu0 %v188
  %497 = vmatprep.subr.mxu0 0.0
  %498 = vmatpush1.msra.mxu0 %v189
  %499 = vmatprep.subr.mxu0 0.0
  %500 = vmatpush1.msra.mxu0 %v190
  %501 = vmatprep.subr.mxu0 0.0
  %502 = vmatpush1.msra.mxu0 0.0
  %503 = vmatprep.subr.mxu0 0.0
  %504 = vmatpush1.msra.mxu0 0.0
  %505 = vmatprep.subr.mxu0 0.0
  %506 = vmatpush1.msra.mxu0 0.0
  %507 = vmatprep.subr.mxu0 0.0
  %508 = vmatpush1.msra.mxu0 0.0
  %509 = vmatprep.subr.mxu0 0.0
  %510 = vmatpush1.msra.mxu0 0.0
  %511 = vmatprep.subr.mxu0 0.0
  %512 = vmatpush1.msra.mxu0 0.0
  %513 = vmatprep.subr.mxu0 0.0
  %514 = vmatpush1.msra.mxu0 0.0
  %515 = vmatprep.subr.mxu0 0.0
  %516 = vmatpush1.msra.mxu0 0.0
  %517 = vmatprep.subr.mxu0 0.0
  %518 = vmatpush1.msra.mxu0 0.0
  %519 = vmatprep.subr.mxu0 0.0
  %520 = vmatpush1.msra.mxu0 0.0
  %521 = vmatprep.subr.mxu0 0.0
  %522 = vmatpush1.msra.mxu0 0.0
  %523 = vmatprep.subr.mxu0 0.0
  %524 = vmatpush1.msra.mxu0 0.0
  %525 = vmatprep.subr.mxu0 0.0
  %526 = vmatpush1.msra.mxu0 0.0
  %527 = vmatprep.subr.mxu0 0.0
  %528 = vmatpush1.msra.mxu0 0.0
  %529 = vmatprep.subr.mxu0 0.0
  %530 = vmatpush1.msra.mxu0 0.0
  %531 = vmatprep.subr.mxu0 0.0
  %532 = vmatpush1.msra.mxu0 0.0
  %533 = vmatprep.mubr.f32.mxu0 0.0
  %534 = vmatmul.mubr.f32.gmra.mrb[0].mxu0 %v465
  %v535 = vpop.f32.mrb[0].mxu0
  %v536 = vadd.f32 0.0, %v535
  %v537 = vpop.f32.mrb[0].mxu0
  %538 = vdwg.mxu0
  %v539 = vsub.f32 %v460, %v536
  %v540 = vmul.f32 %v539, %v270
  %s541 = scalar_lea.vmem [#allocation2], 24
  %v542 = vld [vmem:[%s541] sm:$0xff]
  %v543 = vmul.f32 %v542, %v278
  %v544 = vadd.f32 %v540, %v543
  %v545 = vmul.f32 %v544, %v286
  %v546 = vsub.f32 %v545, %v293
  %vm547 = vcmp.gt.f32.partialorder %v546, 0.0
  %v548 = vsel %vm547, 1, 0
  %v549 = vcvt.s32.f32 %v548
  %s550 = scalar_lea.vmem %s6, 24
  %551 = vst [vmem:[%s550] sm:$0xff] %v549
  %v552 = vadd.f32 %v468, %v549
  %553 = vmatprep.subr.mxu0 0.0
  %554 = vmatpush1.msra.mxu0 %v175
  %555 = vmatprep.subr.mxu0 0.0
  %556 = vmatpush1.msra.mxu0 %v176
  %557 = vmatprep.subr.mxu0 0.0
  %558 = vmatpush1.msra.mxu0 %v177
  %559 = vmatprep.subr.mxu0 0.0
  %560 = vmatpush1.msra.mxu0 %v178
  %561 = vmatprep.subr.mxu0 0.0
  %562 = vmatpush1.msra.mxu0 %v179
  %563 = vmatprep.subr.mxu0 0.0
  %564 = vmatpush1.msra.mxu0 %v180
  %565 = vmatprep.subr.mxu0 0.0
  %566 = vmatpush1.msra.mxu0 %v181
  %567 = vmatprep.subr.mxu0 0.0
  %568 = vmatpush1.msra.mxu0 %v182
  %569 = vmatprep.subr.mxu0 0.0
  %570 = vmatpush1.msra.mxu0 %v183
  %571 = vmatprep.subr.mxu0 0.0
  %572 = vmatpush1.msra.mxu0 %v184
  %573 = vmatprep.subr.mxu0 0.0
  %574 = vmatpush1.msra.mxu0 %v185
  %575 = vmatprep.subr.mxu0 0.0
  %576 = vmatpush1.msra.mxu0 %v186
  %577 = vmatprep.subr.mxu0 0.0
  %578 = vmatpush1.msra.mxu0 %v187
  %579 = vmatprep.subr.mxu0 0.0
  %580 = vmatpush1.msra.mxu0 %v188
  %581 = vmatprep.subr.mxu0 0.0
  %582 = vmatpush1.msra.mxu0 %v189
  %583 = vmatprep.subr.mxu0 0.0
  %584 = vmatpush1.msra.mxu0 %v190
  %585 = vmatprep.subr.mxu0 0.0
  %586 = vmatpush1.msra.mxu0 0.0
  %587 = vmatprep.subr.mxu0 0.0
  %588 = vmatpush1.msra.mxu0 0.0
  %589 = vmatprep.subr.mxu0 0.0
  %590 = vmatpush1.msra.mxu0 0.0
  %591 = vmatprep.subr.mxu0 0.0
  %592 = vmatpush1.msra.mxu0 0.0
  %593 = vmatprep.subr.mxu0 0.0
  %594 = vmatpush1.msra.mxu0 0.0
  %595 = vmatprep.subr.mxu0 0.0
  %596 = vmatpush1.msra.mxu0 0.0
  %597 = vmatprep.subr.mxu0 0.0
  %598 = vmatpush1.msra.mxu0 0.0
  %599 = vmatprep.subr.mxu0 0.0
  %600 = vmatpush1.msra.mxu0 0.0
  %601 = vmatprep.subr.mxu0 0.0
  %602 = vmatpush1.msra.mxu0 0.0
  %603 = vmatprep.subr.mxu0 0.0
  %604 = vmatpush1.msra.mxu0 0.0
  %605 = vmatprep.subr.mxu0 0.0
  %606 = vmatpush1.msra.mxu0 0.0
  %607 = vmatprep.subr.mxu0 0.0
  %608 = vmatpush1.msra.mxu0 0.0
  %609 = vmatprep.subr.mxu0 0.0
  %610 = vmatpush1.msra.mxu0 0.0
  %611 = vmatprep.subr.mxu0 0.0
  %612 = vmatpush1.msra.mxu0 0.0
  %613 = vmatprep.subr.mxu0 0.0
  %614 = vmatpush1.msra.mxu0 0.0
  %615 = vmatprep.subr.mxu0 0.0
  %616 = vmatpush1.msra.mxu0 0.0
  %617 = vmatprep.mubr.f32.mxu0 0.0
  %618 = vmatmul.mubr.f32.gmra.mrb[0].mxu0 %v549
  %v619 = vpop.f32.mrb[0].mxu0
  %v620 = vadd.f32 0.0, %v619
  %v621 = vpop.f32.mrb[0].mxu0
  %622 = vdwg.mxu0
  %v623 = vsub.f32 %v544, %v620
  %v624 = vmul.f32 %v623, %v270
  %s625 = scalar_lea.vmem [#allocation2], 32
  %v626 = vld [vmem:[%s625] sm:$0xff]
  %v627 = vmul.f32 %v626, %v278
  %v628 = vadd.f32 %v624, %v627
  %v629 = vmul.f32 %v628, %v286
  %v630 = vsub.f32 %v629, %v293
  %vm631 = vcmp.gt.f32.partialorder %v630, 0.0
  %v632 = vsel %vm631, 1, 0
  %v633 = vcvt.s32.f32 %v632
  %s634 = scalar_lea.vmem %s6, 32
  %635 = vst [vmem:[%s634] sm:$0xff] %v633
  %v636 = vadd.f32 %v552, %v633
  %637 = vmatprep.subr.mxu0 0.0
  %638 = vmatpush1.msra.mxu0 %v175
  %639 = vmatprep.subr.mxu0 0.0
  %640 = vmatpush1.msra.mxu0 %v176
  %641 = vmatprep.subr.mxu0 0.0
  %642 = vmatpush1.msra.mxu0 %v177
  %643 = vmatprep.subr.mxu0 0.0
  %644 = vmatpush1.msra.mxu0 %v178
  %645 = vmatprep.subr.mxu0 0.0
  %646 = vmatpush1.msra.mxu0 %v179
  %647 = vmatprep.subr.mxu0 0.0
  %648 = vmatpush1.msra.mxu0 %v180
  %649 = vmatprep.subr.mxu0 0.0
  %650 = vmatpush1.msra.mxu0 %v181
  %651 = vmatprep.subr.mxu0 0.0
  %652 = vmatpush1.msra.mxu0 %v182
  %653 = vmatprep.subr.mxu0 0.0
  %654 = vmatpush1.msra.mxu0 %v183
  %655 = vmatprep.subr.mxu0 0.0
  %656 = vmatpush1.msra.mxu0 %v184
  %657 = vmatprep.subr.mxu0 0.0
  %658 = vmatpush1.msra.mxu0 %v185
  %659 = vmatprep.subr.mxu0 0.0
  %660 = vmatpush1.msra.mxu0 %v186
  %661 = vmatprep.subr.mxu0 0.0
  %662 = vmatpush1.msra.mxu0 %v187
  %663 = vmatprep.subr.mxu0 0.0
  %664 = vmatpush1.msra.mxu0 %v188
  %665 = vmatprep.subr.mxu0 0.0
  %666 = vmatpush1.msra.mxu0 %v189
  %667 = vmatprep.subr.mxu0 0.0
  %668 = vmatpush1.msra.mxu0 %v190
  %669 = vmatprep.subr.mxu0 0.0
  %670 = vmatpush1.msra.mxu0 0.0
  %671 = vmatprep.subr.mxu0 0.0
  %672 = vmatpush1.msra.mxu0 0.0
  %673 = vmatprep.subr.mxu0 0.0
  %674 = vmatpush1.msra.mxu0 0.0
  %675 = vmatprep.subr.mxu0 0.0
  %676 = vmatpush1.msra.mxu0 0.0
  %677 = vmatprep.subr.mxu0 0.0
  %678 = vmatpush1.msra.mxu0 0.0
  %679 = vmatprep.subr.mxu0 0.0
  %680 = vmatpush1.msra.mxu0 0.0
  %681 = vmatprep.subr.mxu0 0.0
  %682 = vmatpush1.msra.mxu0 0.0
  %683 = vmatprep.subr.mxu0 0.0
  %684 = vmatpush1.msra.mxu0 0.0
  %685 = vmatprep.subr.mxu0 0.0
  %686 = vmatpush1.msra.mxu0 0.0
  %687 = vmatprep.subr.mxu0 0.0
  %688 = vmatpush1.msra.mxu0 0.0
  %689 = vmatprep.subr.mxu0 0.0
  %690 = vmatpush1.msra.mxu0 0.0
  %691 = vmatprep.subr.mxu0 0.0
  %692 = vmatpush1.msra.mxu0 0.0
  %693 = vmatprep.subr.mxu0 0.0
  %694 = vmatpush1.msra.mxu0 0.0
  %695 = vmatprep.subr.mxu0 0.0
  %696 = vmatpush1.msra.mxu0 0.0
  %697 = vmatprep.subr.mxu0 0.0
  %698 = vmatpush1.msra.mxu0 0.0
  %699 = vmatprep.subr.mxu0 0.0
  %700 = vmatpush1.msra.mxu0 0.0
  %701 = vmatprep.mubr.f32.mxu0 0.0
  %702 = vmatmul.mubr.f32.gmra.mrb[0].mxu0 %v633
  %v703 = vpop.f32.mrb[0].mxu0
  %v704 = vadd.f32 0.0, %v703
  %v705 = vpop.f32.mrb[0].mxu0
  %706 = vdwg.mxu0
  %v707 = vsub.f32 %v628, %v704
  %v708 = vmul.f32 %v707, %v270
  %s709 = scalar_lea.vmem [#allocation2], 40
  %v710 = vld [vmem:[%s709] sm:$0xff]
  %v711 = vmul.f32 %v710, %v278
  %v712 = vadd.f32 %v708, %v711
  %v713 = vmul.f32 %v712, %v286
  %v714 = vsub.f32 %v713, %v293
  %vm715 = vcmp.gt.f32.partialorder %v714, 0.0
  %v716 = vsel %vm715, 1, 0
  %v717 = vcvt.s32.f32 %v716
  %s718 = scalar_lea.vmem %s6, 40
  %719 = vst [vmem:[%s718] sm:$0xff] %v717
  %v720 = vadd.f32 %v636, %v717
  %721 = vmatprep.subr.mxu0 0.0
  %722 = vmatpush1.msra.mxu0 %v175
  %723 = vmatprep.subr.mxu0 0.0
  %724 = vmatpush1.msra.mxu0 %v176
  %725 = vmatprep.subr.mxu0 0.0
  %726 = vmatpush1.msra.mxu0 %v177
  %727 = vmatprep.subr.mxu0 0.0
  %728 = vmatpush1.msra.mxu0 %v178
  %729 = vmatprep.subr.mxu0 0.0
  %730 = vmatpush1.msra.mxu0 %v179
  %731 = vmatprep.subr.mxu0 0.0
  %732 = vmatpush1.msra.mxu0 %v180
  %733 = vmatprep.subr.mxu0 0.0
  %734 = vmatpush1.msra.mxu0 %v181
  %735 = vmatprep.subr.mxu0 0.0
  %736 = vmatpush1.msra.mxu0 %v182
  %737 = vmatprep.subr.mxu0 0.0
  %738 = vmatpush1.msra.mxu0 %v183
  %739 = vmatprep.subr.mxu0 0.0
  %740 = vmatpush1.msra.mxu0 %v184
  %741 = vmatprep.subr.mxu0 0.0
  %742 = vmatpush1.msra.mxu0 %v185
  %743 = vmatprep.subr.mxu0 0.0
  %744 = vmatpush1.msra.mxu0 %v186
  %745 = vmatprep.subr.mxu0 0.0
  %746 = vmatpush1.msra.mxu0 %v187
  %747 = vmatprep.subr.mxu0 0.0
  %748 = vmatpush1.msra.mxu0 %v188
  %749 = vmatprep.subr.mxu0 0.0
  %750 = vmatpush1.msra.mxu0 %v189
  %751 = vmatprep.subr.mxu0 0.0
  %752 = vmatpush1.msra.mxu0 %v190
  %753 = vmatprep.subr.mxu0 0.0
  %754 = vmatpush1.msra.mxu0 0.0
  %755 = vmatprep.subr.mxu0 0.0
  %756 = vmatpush1.msra.mxu0 0.0
  %757 = vmatprep.subr.mxu0 0.0
  %758 = vmatpush1.msra.mxu0 0.0
  %759 = vmatprep.subr.mxu0 0.0
  %760 = vmatpush1.msra.mxu0 0.0
  %761 = vmatprep.subr.mxu0 0.0
  %762 = vmatpush1.msra.mxu0 0.0
  %763 = vmatprep.subr.mxu0 0.0
  %764 = vmatpush1.msra.mxu0 0.0
  %765 = vmatprep.subr.mxu0 0.0
  %766 = vmatpush1.msra.mxu0 0.0
  %767 = vmatprep.subr.mxu0 0.0
  %768 = vmatpush1.msra.mxu0 0.0
  %769 = vmatprep.subr.mxu0 0.0
  %770 = vmatpush1.msra.mxu0 0.0
  %771 = vmatprep.subr.mxu0 0.0
  %772 = vmatpush1.msra.mxu0 0.0
  %773 = vmatprep.subr.mxu0 0.0
  %774 = vmatpush1.msra.mxu0 0.0
  %775 = vmatprep.subr.mxu0 0.0
  %776 = vmatpush1.msra.mxu0 0.0
  %777 = vmatprep.subr.mxu0 0.0
  %778 = vmatpush1.msra.mxu0 0.0
  %779 = vmatprep.subr.mxu0 0.0
  %780 = vmatpush1.msra.mxu0 0.0
  %781 = vmatprep.subr.mxu0 0.0
  %782 = vmatpush1.msra.mxu0 0.0
  %783 = vmatprep.subr.mxu0 0.0
  %784 = vmatpush1.msra.mxu0 0.0
  %785 = vmatprep.mubr.f32.mxu0 0.0
  %786 = vmatmul.mubr.f32.gmra.mrb[0].mxu0 %v717
  %v787 = vpop.f32.mrb[0].mxu0
  %v788 = vadd.f32 0.0, %v787
  %v789 = vpop.f32.mrb[0].mxu0
  %790 = vdwg.mxu0
  %v791 = vsub.f32 %v712, %v788
  %v792 = vmul.f32 %v791, %v270
  %s793 = scalar_lea.vmem [#allocation2], 48
  %v794 = vld [vmem:[%s793] sm:$0xff]
  %v795 = vmul.f32 %v794, %v278
  %v796 = vadd.f32 %v792, %v795
  %v797 = vmul.f32 %v796, %v286
  %v798 = vsub.f32 %v797, %v293
  %vm799 = vcmp.gt.f32.partialorder %v798, 0.0
  %v800 = vsel %vm799, 1, 0
  %v801 = vcvt.s32.f32 %v800
  %s802 = scalar_lea.vmem %s6, 48
  %803 = vst [vmem:[%s802] sm:$0xff] %v801
  %v804 = vadd.f32 %v720, %v801
  %805 = vmatprep.subr.mxu0 0.0
  %806 = vmatpush1.msra.mxu0 %v175
  %807 = vmatprep.subr.mxu0 0.0
  %808 = vmatpush1.msra.mxu0 %v176
  %809 = vmatprep.subr.mxu0 0.0
  %810 = vmatpush1.msra.mxu0 %v177
  %811 = vmatprep.subr.mxu0 0.0
  %812 = vmatpush1.msra.mxu0 %v178
  %813 = vmatprep.subr.mxu0 0.0
  %814 = vmatpush1.msra.mxu0 %v179
  %815 = vmatprep.subr.mxu0 0.0
  %816 = vmatpush1.msra.mxu0 %v180
  %817 = vmatprep.subr.mxu0 0.0
  %818 = vmatpush1.msra.mxu0 %v181
  %819 = vmatprep.subr.mxu0 0.0
  %820 = vmatpush1.msra.mxu0 %v182
  %821 = vmatprep.subr.mxu0 0.0
  %822 = vmatpush1.msra.mxu0 %v183
  %823 = vmatprep.subr.mxu0 0.0
  %824 = vmatpush1.msra.mxu0 %v184
  %825 = vmatprep.subr.mxu0 0.0
  %826 = vmatpush1.msra.mxu0 %v185
  %827 = vmatprep.subr.mxu0 0.0
  %828 = vmatpush1.msra.mxu0 %v186
  %829 = vmatprep.subr.mxu0 0.0
  %830 = vmatpush1.msra.mxu0 %v187
  %831 = vmatprep.subr.mxu0 0.0
  %832 = vmatpush1.msra.mxu0 %v188
  %833 = vmatprep.subr.mxu0 0.0
  %834 = vmatpush1.msra.mxu0 %v189
  %835 = vmatprep.subr.mxu0 0.0
  %836 = vmatpush1.msra.mxu0 %v190
  %837 = vmatprep.subr.mxu0 0.0
  %838 = vmatpush1.msra.mxu0 0.0
  %839 = vmatprep.subr.mxu0 0.0
  %840 = vmatpush1.msra.mxu0 0.0
  %841 = vmatprep.subr.mxu0 0.0
  %842 = vmatpush1.msra.mxu0 0.0
  %843 = vmatprep.subr.mxu0 0.0
  %844 = vmatpush1.msra.mxu0 0.0
  %845 = vmatprep.subr.mxu0 0.0
  %846 = vmatpush1.msra.mxu0 0.0
  %847 = vmatprep.subr.mxu0 0.0
  %848 = vmatpush1.msra.mxu0 0.0
  %849 = vmatprep.subr.mxu0 0.0
  %850 = vmatpush1.msra.mxu0 0.0
  %851 = vmatprep.subr.mxu0 0.0
  %852 = vmatpush1.msra.mxu0 0.0
  %853 = vmatprep.subr.mxu0 0.0
  %854 = vmatpush1.msra.mxu0 0.0
  %855 = vmatprep.subr.mxu0 0.0
  %856 = vmatpush1.msra.mxu0 0.0
  %857 = vmatprep.subr.mxu0 0.0
  %858 = vmatpush1.msra.mxu0 0.0
  %859 = vmatprep.subr.mxu0 0.0
  %860 = vmatpush1.msra.mxu0 0.0
  %861 = vmatprep.subr.mxu0 0.0
  %862 = vmatpush1.msra.mxu0 0.0
  %863 = vmatprep.subr.mxu0 0.0
  %864 = vmatpush1.msra.mxu0 0.0
  %865 = vmatprep.subr.mxu0 0.0
  %866 = vmatpush1.msra.mxu0 0.0
  %867 = vmatprep.subr.mxu0 0.0
  %868 = vmatpush1.msra.mxu0 0.0
  %869 = vmatprep.mubr.f32.mxu0 0.0
  %870 = vmatmul.mubr.f32.gmra.mrb[0].mxu0 %v801
  %v871 = vpop.f32.mrb[0].mxu0
  %v872 = vadd.f32 0.0, %v871
  %v873 = vpop.f32.mrb[0].mxu0
  %874 = vdwg.mxu0
  %v875 = vsub.f32 %v796, %v872
  %v876 = vmul.f32 %v875, %v270
  %s877 = scalar_lea.vmem [#allocation2], 56
  %v878 = vld [vmem:[%s877] sm:$0xff]
  %v879 = vmul.f32 %v878, %v278
  %v880 = vadd.f32 %v876, %v879
  %v881 = vmul.f32 %v880, %v286
  %v882 = vsub.f32 %v881, %v293
  %vm883 = vcmp.gt.f32.partialorder %v882, 0.0
  %v884 = vsel %vm883, 1, 0
  %v885 = vcvt.s32.f32 %v884
  %s886 = scalar_lea.vmem %s6, 56
  %887 = vst [vmem:[%s886] sm:$0xff] %v885
  %v888 = vadd.f32 %v804, %v885
  %889 = vadd.xlane.f32.xlu0 %v888
  %v890 = vpop.xlane.xlu0 %889
  %v891 = vrot.slane %v890, 4
  %v892 = vadd.f32 %v890, %v891
  %v893 = vrot.slane %v892, 2
  %v894 = vadd.f32 %v892, %v893
  %v895 = vrot.slane %v894, 1
  %v896 = vadd.f32 %v894, %v895
  %s897 = vtos %v896
  %v898 = vstv %s897
  %899 = vst [vmem:[%s7] sm:$0xff] %v898
  // Predicated region
  $region26: #{spiking_dense_forward.1} parent=0 // pred_check
    _
  $region27: #{spiking_dense_forward.1} parent=0 // pred_check_branch
    %901 = sbr.rel (0) target = $region29
  $region28: #{spiking_dense_forward.1} parent=0 // pred_region
    _
  $region29: #{spiking_dense_forward.1} parent=0 // pred_fallthru
    _
  // Predicated region
  $region30: #{spiking_dense_forward.1} parent=0 // pred_check
    _
  $region31: #{spiking_dense_forward.1} parent=0 // pred_check_branch
    %903 = sbr.rel (0) target = $region33
  $region32: #{spiking_dense_forward.1} parent=0 // pred_region
    _
  $region33: #{spiking_dense_forward.1} parent=0 // pred_fallthru
    _
  // Predicated region
  $region34: #{spiking_dense_forward.1} parent=0 // pred_check
    _
  $region35: #{spiking_dense_forward.1} parent=0 // pred_check_branch
    %905 = sbr.rel (0) target = $region37
  $region36: #{spiking_dense_forward.1} parent=0 // pred_region
    _
  $region37: #{spiking_dense_forward.1} parent=0 // pred_fallthru
    _
  // Predicated region
  $region38: #{spiking_dense_forward.1} parent=0 // pred_check
    _
  $region39: #{spiking_dense_forward.1} parent=0 // pred_check_branch
    %907 = sbr.rel (0) target = $region41
  $region40: #{spiking_dense_forward.1} parent=0 // pred_region
    _
  $region41: #{spiking_dense_forward.1} parent=0 // pred_fallthru
    _

</llo_original>
